<compile_context>
chip_gen: v6e
topology: v6e:2x2x1
jax: 0.10.0
libtpu: 0.0.40
codegen_flags: <defaults>
</compile_context>

<pallas_src>
import functools

import jax
import jax.numpy as jnp
from jax.experimental import pallas as pl
from jax.experimental.pallas import tpu as pltpu


def _round_up(v, m):
    return (v + m - 1) // m * m


def _linear_kernel_body(x_ref, wa_ref, wb_ref, out_ref, acc_ref):
    r = pl.program_id(2)

    @pl.when(r == 0)
    def _():
        acc_ref[...] = jnp.zeros_like(acc_ref)

    # Bias already folded into row K of the weights (ones column in x), so a
    # rank step is just two MXU dots + one multiply-accumulate on the VPU.
    a = jnp.dot(x_ref[...], wa_ref[0], preferred_element_type=jnp.float32)
    b = jnp.dot(x_ref[...], wb_ref[0], preferred_element_type=jnp.float32)
    acc_ref[...] += a * b

    @pl.when(r == pl.num_programs(2) - 1)
    def _():
        out_ref[...] = acc_ref[...].astype(out_ref.dtype)


def linear_kernel(x, wa, ba, wb, bb):
    """sum_i (x @ wa[i] + ba[i]) * (x @ wb[i] + bb[i]).

    x:      (M, K)
    wa, wb: (rank, K, N)   (pre-transposed from nn.Linear's (out, in))
    ba, bb: (rank, N)
    returns (M, N) in x.dtype
    """
    M, K = x.shape
    rank, _, N = wa.shape

    # ---------------- host-side packing (one-time layout plumbing) ----------
    # K padded to 128 (bias row lives at index K); N padded to 256 for
    # 256-wide MXU-filling output chunks on v6e/v7x (still 128-aligned, so
    # lane-dense stores everywhere).
    Kp = _round_up(K + 1, 128)
    n_pad = _round_up(N, 256)
    tn = min(n_pad, 256)
    n_tiles = n_pad // tn

    w_dtype = wa.dtype
    wa_p = jnp.zeros((rank, Kp, n_pad), dtype=w_dtype)
    wa_p = wa_p.at[:, :K, :N].set(wa)
    wa_p = wa_p.at[:, K, :N].set(ba.astype(w_dtype))   # bias folded as row K
    wb_p = jnp.zeros((rank, Kp, n_pad), dtype=w_dtype)
    wb_p = wb_p.at[:, :K, :N].set(wb)
    wb_p = wb_p.at[:, K, :N].set(bb.astype(w_dtype))

    # Batch tiling: sublane pack of the activation dtype (8 f32 / 16 bf16 /
    # 32 int8); cap tm at 512 and make sure the parallel grid has >=2 steps
    # when the problem is big enough (v7x has 2 TensorCores).
    sub = max(8, 32 // jnp.dtype(x.dtype).itemsize)
    m_pad = _round_up(M, sub)
    tm = min(512, m_pad)
    if (m_pad // tm) * n_tiles < 2 and m_pad >= 2 * sub:
        tm = _round_up(m_pad // 2, sub)
    m_pad = _round_up(m_pad, tm)
    m_tiles = m_pad // tm

    x_p = jnp.zeros((m_pad, Kp), dtype=x.dtype)
    x_p = x_p.at[:M, :K].set(x)
    x_p = x_p.at[:M, K].set(jnp.ones((M,), dtype=x.dtype))  # ones col -> bias

    grid = (m_tiles, n_tiles, rank)

    # VMEM budget: x tile + (wa, wb) chunks + out tile (double-buffered) + acc.
    itemsize_x = jnp.dtype(x.dtype).itemsize
    itemsize_w = jnp.dtype(w_dtype).itemsize
    vmem_bytes = (2 * tm * Kp * itemsize_x
                  + 2 * 2 * Kp * tn * itemsize_w
                  + 2 * tm * tn * itemsize_x
                  + tm * tn * 4)
    vmem_limit = int(min(max(2 * vmem_bytes, 32 << 20), 64 << 20))

    cost = pl.CostEstimate(
        flops=2 * (2 * rank) * m_pad * Kp * n_pad + 2 * rank * m_pad * n_pad,
        transcendentals=0,
        bytes_accessed=(x_p.size * itemsize_x
                        + (wa_p.size + wb_p.size) * itemsize_w
                        + m_pad * n_pad * itemsize_x),
    )

    out = pl.pallas_call(
        _linear_kernel_body,
        out_shape=jax.ShapeDtypeStruct((m_pad, n_pad), x.dtype),
        grid_spec=pltpu.PrefetchScalarGridSpec(
            num_scalar_prefetch=0,
            grid=grid,
            in_specs=[
                # x tile: constant across (j, r) -> fetched once per batch tile
                pl.BlockSpec((tm, Kp), lambda i, j, r: (i, 0)),
                # per-rank, per-N-chunk weight blocks (bias folded in)
                pl.BlockSpec((1, Kp, tn), lambda i, j, r: (r, 0, j)),
                pl.BlockSpec((1, Kp, tn), lambda i, j, r: (r, 0, j)),
            ],
            out_specs=pl.BlockSpec((tm, tn), lambda i, j, r: (i, j)),
            scratch_shapes=[pltpu.VMEM((tm, tn), jnp.float32)],
        ),
        compiler_params=pltpu.CompilerParams(
            dimension_semantics=("parallel", "parallel", "arbitrary"),
            vmem_limit_bytes=vmem_limit,
        ),
        cost_estimate=cost,
    )(x_p, wa_p, wb_p)

    return out[:M, :N]


def linear_kernel_ref(x, wa, ba, wb, bb):
    """Pure-JAX reference mirroring the PyTorch forward (f32 accumulation)."""
    xf = x.astype(jnp.float32)
    out = jnp.zeros((x.shape[0], wa.shape[-1]), dtype=jnp.float32)
    for i in range(wa.shape[0]):
        a = xf @ wa[i].astype(jnp.float32) + ba[i].astype(jnp.float32)
        b = xf @ wb[i].astype(jnp.float32) + bb[i].astype(jnp.float32)
        out = out + a * b
    return out.astype(x.dtype)


if __name__ == "__main__":
    # Small, deterministic problem: rank=3 linear layers of 32 -> 32 on batch 16.
    rank, M, K, N = 3, 16, 32, 32
    key = jax.random.PRNGKey(0)
    kx, kwa, kba, kwb, kbb = jax.random.split(key, 5)

    x = jax.random.normal(kx, (M, K), dtype=jnp.float32)
    # nn.Linear weights are (out, in); stored pre-transposed as (rank, K, N).
    wa = jax.random.normal(kwa, (rank, K, N), dtype=jnp.float32) * 0.1
    ba = jax.random.normal(kba, (rank, N), dtype=jnp.float32) * 0.1
    wb = jax.random.normal(kwb, (rank, K, N), dtype=jnp.float32) * 0.1
    bb = jax.random.normal(kbb, (rank, N), dtype=jnp.float32) * 0.1

    out = linear_kernel(x, wa, ba, wb, bb)
    jax.block_until_ready(out)

    ref = linear_kernel_ref(x, wa, ba, wb, bb)
    assert out.shape == ref.shape, f"shape mismatch {out.shape} vs {ref.shape}"
    assert jnp.allclose(out, ref, atol=1e-4, rtol=1e-4), "mismatch vs reference"

    print("KERNEL_OK")
</pallas_src>

<mosaic_0001>
module attributes {stable_mosaic.version = 11 : i64} {
  func.func @_linear_kernel_body(%arg0: i32, %arg1: i32, %arg2: i32, %arg3: memref<8x128xf32, #tpu.memory_space<vmem>>, %arg4: memref<1x128x256xf32, #tpu.memory_space<vmem>>, %arg5: memref<1x128x256xf32, #tpu.memory_space<vmem>>, %arg6: memref<8x256xf32, #tpu.memory_space<vmem>>, %arg7: memref<8x256xf32, #tpu.memory_space<vmem>>) attributes {dimension_semantics = [#tpu.dimension_semantics<parallel>, #tpu.dimension_semantics<parallel>, #tpu.dimension_semantics<arbitrary>], iteration_bounds = array<i64: 2, 1, 3>, scalar_prefetch = 0 : i64, scratch_operands = 1 : i64, tpu.core_type = #tpu.core_type<tc>, window_params = [{transform_indices = @transform_0, window_bounds = array<i64: 8, 128>}, {transform_indices = @transform_1, window_bounds = array<i64: 1, 128, 256>}, {transform_indices = @transform_2, window_bounds = array<i64: 1, 128, 256>}, {transform_indices = @transform_3, window_bounds = array<i64: 8, 256>}]} {
    %c0_i32 = arith.constant 0 : i32
    %0 = arith.cmpi eq, %arg2, %c0_i32 : i32
    %1 = arith.extui %0 : i1 to i32
    %c0_i32_0 = arith.constant 0 : i32
    %2 = arith.cmpi ne, %1, %c0_i32_0 : i32
    scf.if %2 {
      %cst_16 = arith.constant 0.000000e+00 : f32
      %18 = vector.broadcast %cst_16 : f32 to vector<8x256xf32>
      %c0_17 = arith.constant 0 : index
      %c0_18 = arith.constant 0 : index
      %19 = vector.load %arg7[%c0_17, %c0_18] : memref<8x256xf32, #tpu.memory_space<vmem>>, vector<8x256xf32>
      tpu.vector_store %arg7[%c0_17, %c0_18], %18 {strides = array<i32>} : memref<8x256xf32, #tpu.memory_space<vmem>>, vector<8x256xf32>,
    } else {
    }
    %c0 = arith.constant 0 : index
    %c0_1 = arith.constant 0 : index
    %3 = vector.load %arg3[%c0, %c0_1] : memref<8x128xf32, #tpu.memory_space<vmem>>, vector<8x128xf32>
    %c0_2 = arith.constant 0 : index
    %c0_3 = arith.constant 0 : index
    %c0_4 = arith.constant 0 : index
    %4 = vector.load %arg4[%c0_2, %c0_3, %c0_4] : memref<1x128x256xf32, #tpu.memory_space<vmem>>, vector<1x128x256xf32>
    %5 = vector.shape_cast %4 : vector<1x128x256xf32> to vector<128x256xf32>
    %cst = arith.constant dense<0.000000e+00> : vector<8x256xf32>
    %6 = tpu.matmul %3, %5, %cst {dimension_numbers = #tpu.dot_dimension_numbers<[1], [0], [0], [1], [0, 0, 1, 1], [], []>} : vector<8x128xf32>, vector<128x256xf32>, vector<8x256xf32> -> vector<8x256xf32>
    %c0_5 = arith.constant 0 : index
    %c0_6 = arith.constant 0 : index
    %7 = vector.load %arg3[%c0_5, %c0_6] : memref<8x128xf32, #tpu.memory_space<vmem>>, vector<8x128xf32>
    %c0_7 = arith.constant 0 : index
    %c0_8 = arith.constant 0 : index
    %c0_9 = arith.constant 0 : index
    %8 = vector.load %arg5[%c0_7, %c0_8, %c0_9] : memref<1x128x256xf32, #tpu.memory_space<vmem>>, vector<1x128x256xf32>
    %9 = vector.shape_cast %8 : vector<1x128x256xf32> to vector<128x256xf32>
    %cst_10 = arith.constant dense<0.000000e+00> : vector<8x256xf32>
    %10 = tpu.matmul %7, %9, %cst_10 {dimension_numbers = #tpu.dot_dimension_numbers<[1], [0], [0], [1], [0, 0, 1, 1], [], []>} : vector<8x128xf32>, vector<128x256xf32>, vector<8x256xf32> -> vector<8x256xf32>
    %c0_11 = arith.constant 0 : index
    %c0_12 = arith.constant 0 : index
    %11 = vector.load %arg7[%c0_11, %c0_12] : memref<8x256xf32, #tpu.memory_space<vmem>>, vector<8x256xf32>
    %12 = arith.mulf %6, %10 : vector<8x256xf32>
    %13 = arith.addf %11, %12 : vector<8x256xf32>
    %c0_13 = arith.constant 0 : index
    %c0_14 = arith.constant 0 : index
    %14 = vector.load %arg7[%c0_13, %c0_14] : memref<8x256xf32, #tpu.memory_space<vmem>>, vector<8x256xf32>
    tpu.vector_store %arg7[%c0_13, %c0_14], %13 {strides = array<i32>} : memref<8x256xf32, #tpu.memory_space<vmem>>, vector<8x256xf32>,
    %c2_i32 = arith.constant 2 : i32
    %15 = arith.cmpi eq, %arg2, %c2_i32 : i32
    %16 = arith.extui %15 : i1 to i32
    %c0_i32_15 = arith.constant 0 : i32
    %17 = arith.cmpi ne, %16, %c0_i32_15 : i32
    scf.if %17 {
      %c0_16 = arith.constant 0 : index
      %c0_17 = arith.constant 0 : index
      %18 = vector.load %arg7[%c0_16, %c0_17] : memref<8x256xf32, #tpu.memory_space<vmem>>, vector<8x256xf32>
      %c0_18 = arith.constant 0 : index
      %c0_19 = arith.constant 0 : index
      %19 = vector.load %arg6[%c0_18, %c0_19] : memref<8x256xf32, #tpu.memory_space<vmem>>, vector<8x256xf32>
      tpu.vector_store %arg6[%c0_18, %c0_19], %18 {strides = array<i32>} : memref<8x256xf32, #tpu.memory_space<vmem>>, vector<8x256xf32>,
    } else {
    }
    return
  }
  func.func @transform_0(%arg0: i32, %arg1: i32, %arg2: i32) -> (i32, i32) {
    %c0_i32 = arith.constant 0 : i32
    %c0_i32_0 = arith.constant 0 : i32
    return %arg0, %c0_i32 : i32, i32
  }
  func.func @transform_1(%arg0: i32, %arg1: i32, %arg2: i32) -> (i32, i32, i32) {
    %c0_i32 = arith.constant 0 : i32
    %c0_i32_0 = arith.constant 0 : i32
    return %arg2, %c0_i32, %arg1 : i32, i32, i32
  }
  func.func @transform_2(%arg0: i32, %arg1: i32, %arg2: i32) -> (i32, i32, i32) {
    %c0_i32 = arith.constant 0 : i32
    %c0_i32_0 = arith.constant 0 : i32
    return %arg2, %c0_i32, %arg1 : i32, i32, i32
  }
  func.func @transform_3(%arg0: i32, %arg1: i32, %arg2: i32) -> (i32, i32) {
    %c0_i32 = arith.constant 0 : i32
    return %arg0, %arg1 : i32, i32
  }
}

</mosaic_0001>

<llo_original>
// kernel: tpu_custom_call.1
$region0: #{tpu_custom_call.1}
  #allocation0 [shape = 'u32[]', space=smem, size = 0x4, offset = 0x4, fixed_abs, tag = 'smem constant byte address 0x4 - core index']
  #allocation1 [shape = 'u32[144,128]{1,0:T(1,128)}', space=vmem, size = 0x12000, scoped, tag = 'internal scratch']
  #allocation2 [shape = 'f32[8,256]{1,0:T(8,128)}', space=vmem, size = 0x2000, scoped, tag = 'scratch operand']
  %s0 = inlined_call_operand.hbm [shape: f32[16,128], index: 0, kind: input, shape index: {}]
  %s1 = inlined_call_operand.hbm [shape: f32[3,128,256], index: 1, kind: input, shape index: {}]
  %s2 = inlined_call_operand.hbm [shape: f32[3,128,256], index: 2, kind: input, shape index: {}]
  %s3 = inlined_call_operand.hbm [shape: f32[16,256], index: 3, kind: output, shape index: {}]
  %s4 = sld [smem:[#allocation0]]
  $region65: #{tpu_custom_call.1} parent=0
    _
  %s6 = ssub.s32 1, %s4
  %s7 = scalar_select 0, %s6, %s4
  $region1: #{tpu_custom_call.1} parent=0
    #allocation3 [shape = 'u8[8192]{0}', space=vmem, size = 0x2000, scoped, tag = 'input window, operand 0']
    #allocation4 [shape = 's32[2]{0}', space=sflag, size = 0x8, scoped, tag = 'scoped memory for tpu_custom_call.1']
    #allocation5 [shape = 's32[2]{0}', space=sflag, size = 0x8, scoped, tag = 'scoped memory for tpu_custom_call.1']
    #allocation6 [shape = 'u8[262144]{0}', space=vmem, size = 0x40000, scoped, tag = 'input window, operand 1']
    #allocation7 [shape = 's32[2]{0}', space=sflag, size = 0x8, scoped, tag = 'scoped memory for tpu_custom_call.1']
    #allocation8 [shape = 'u8[262144]{0}', space=vmem, size = 0x40000, scoped, tag = 'input window, operand 2']
    #allocation9 [shape = 'u8[16384]{0}', space=vmem, size = 0x4000, scoped, tag = 'output window, operand 0']
    %8 = vsyncpa [#allocation4], 0
    %s9 = scalar_lea.sflag [#allocation4], 1
    %10 = vsyncpa %s9, 0
    %11 = vsyncpa [#allocation7], 0
    %s12 = scalar_lea.sflag [#allocation7], 1
    %13 = vsyncpa %s12, 0
    %14 = vsyncpa [#allocation5], 0
    %s15 = scalar_lea.sflag [#allocation5], 1
    %16 = vsyncpa %s15, 0
    loop: start=0, step=1, limit=8
    $region2: #{tpu_custom_call.1} parent=1 // loop_pre_header
      _
    $region3: #{tpu_custom_call.1} parent=1 // loop_header
      %s18 = sphi 0, %s22
      %p19 = scmp.ge.s32.totalorder %s18, 8
      %s25 = sphi 0, %s44
      %s26 = sphi 0, %s40
      %s27 = sphi 0, %s36
      %s28 = sphi 0, %s25
      %s29 = sphi 0, %s26
      %s30 = sphi 0, %s27
      %s31 = sphi 0, %s28
      %s32 = sphi 0, %s29
      %s33 = sphi 0, %s30
      %s47 = sphi 0, %s49
      %s50 = sphi 0, %s47
      %s51 = sphi 0, %s50
      %s67 = sphi 0, %s51
      %s75 = sphi 0, %s77
      %s78 = sphi 0, %s75
      %s79 = sphi 0, %s78
      %s95 = sphi 0, %s79
      %s103 = sphi 0, %s105
      %s106 = sphi 0, %s103
      %s107 = sphi 0, %s106
      %s123 = sphi 0, %s107
      %s131 = sphi 0, %s133
      %s134 = sphi 0, %s131
      %s135 = sphi 0, %s134
      %s151 = sphi 0, %s135
    $region4: #{tpu_custom_call.1} parent=1 // loop_header_branch
      %21 = sbr.rel (%p19) target = $region8
    $region5: #{tpu_custom_call.1} parent=1 // loop_body
      %s23 = ssub.s32 %s18, 1
      %s24 = ssub.s32 %s18, 2
      %s34 = sadd.s32 1, %s27
      %p35 = scmp.ge.s32.totalorder %s34, 3
      %s36 = scalar_select %p35, 0, %s34
      %s37 = sadd.s32 1, %s26
      %s38 = scalar_select %p35, %s37, %s26
      %p39 = scmp.ge.s32.totalorder %s38, 1
      %s40 = scalar_select %p39, 0, %s38
      %s41 = sadd.s32 1, %s25
      %s42 = scalar_select %p39, %s41, %s25
      %p43 = scmp.ge.s32.totalorder %s42, 2
      %s44 = scalar_select %p43, 0, %s42
      %s45 = ssub.s32 %s25, %s44
      %p46 = scmp.eq.s32.totalorder %s45, 0
      %s48 = sadd.s32 %s47, 1
      %s49 = scalar_select %p46, %s47, %s48
      %p52 = pneg %p46
      %p53 = scmp.eq.s32.totalorder %s18, 5
      %p54 = por %p52, %p53
      %p55 = scmp.ne.s32.totalorder %s47, %s50
      %p56 = scmp.eq.s32.totalorder %s18, 0
      %p57 = por %p55, %p56
      %p58 = scmp.ne.s32.totalorder %s47, %s50
      %p59 = scmp.eq.s32.totalorder %s23, 5
      %p60 = por %p58, %p59
      %p61 = scmp.ne.s32.totalorder %s50, %s51
      %p62 = scmp.eq.s32.totalorder %s23, 0
      %p63 = por %p61, %p62
      %p64 = scmp.ne.s32.totalorder %s50, %s51
      %p65 = scmp.eq.s32.totalorder %s24, 5
      %p66 = por %p64, %p65
      %p68 = scmp.ne.s32.totalorder %s51, %s67
      %p69 = scmp.eq.s32.totalorder %s24, 0
      %p70 = por %p68, %p69
      %s71 = ssub.s32 %s27, %s36
      %s72 = ssub.s32 %s26, %s40
      %s73 = sor.u32 %s71, %s72
      %p74 = scmp.eq.s32.totalorder %s73, 0
      %s76 = sadd.s32 %s75, 1
      %s77 = scalar_select %p74, %s75, %s76
      %p80 = pneg %p74
      %p81 = scmp.eq.s32.totalorder %s18, 5
      %p82 = por %p80, %p81
      %p83 = scmp.ne.s32.totalorder %s75, %s78
      %p84 = scmp.eq.s32.totalorder %s18, 0
      %p85 = por %p83, %p84
      %p86 = scmp.ne.s32.totalorder %s75, %s78
      %p87 = scmp.eq.s32.totalorder %s23, 5
      %p88 = por %p86, %p87
      %p89 = scmp.ne.s32.totalorder %s78, %s79
      %p90 = scmp.eq.s32.totalorder %s23, 0
      %p91 = por %p89, %p90
      %p92 = scmp.ne.s32.totalorder %s78, %s79
      %p93 = scmp.eq.s32.totalorder %s24, 5
      %p94 = por %p92, %p93
      %p96 = scmp.ne.s32.totalorder %s79, %s95
      %p97 = scmp.eq.s32.totalorder %s24, 0
      %p98 = por %p96, %p97
      %s99 = ssub.s32 %s27, %s36
      %s100 = ssub.s32 %s26, %s40
      %s101 = sor.u32 %s99, %s100
      %p102 = scmp.eq.s32.totalorder %s101, 0
      %s104 = sadd.s32 %s103, 1
      %s105 = scalar_select %p102, %s103, %s104
      %p108 = pneg %p102
      %p109 = scmp.eq.s32.totalorder %s18, 5
      %p110 = por %p108, %p109
      %p111 = scmp.ne.s32.totalorder %s103, %s106
      %p112 = scmp.eq.s32.totalorder %s18, 0
      %p113 = por %p111, %p112
      %p114 = scmp.ne.s32.totalorder %s103, %s106
      %p115 = scmp.eq.s32.totalorder %s23, 5
      %p116 = por %p114, %p115
      %p117 = scmp.ne.s32.totalorder %s106, %s107
      %p118 = scmp.eq.s32.totalorder %s23, 0
      %p119 = por %p117, %p118
      %p120 = scmp.ne.s32.totalorder %s106, %s107
      %p121 = scmp.eq.s32.totalorder %s24, 5
      %p122 = por %p120, %p121
      %p124 = scmp.ne.s32.totalorder %s107, %s123
      %p125 = scmp.eq.s32.totalorder %s24, 0
      %p126 = por %p124, %p125
      %s127 = ssub.s32 %s25, %s44
      %s128 = ssub.s32 %s26, %s40
      %s129 = sor.u32 %s127, %s128
      %p130 = scmp.eq.s32.totalorder %s129, 0
      %s132 = sadd.s32 %s131, 1
      %s133 = scalar_select %p130, %s131, %s132
      %p136 = pneg %p130
      %p137 = scmp.eq.s32.totalorder %s18, 5
      %p138 = por %p136, %p137
      %p139 = scmp.ne.s32.totalorder %s131, %s134
      %p140 = scmp.eq.s32.totalorder %s18, 0
      %p141 = por %p139, %p140
      %p142 = scmp.ne.s32.totalorder %s131, %s134
      %p143 = scmp.eq.s32.totalorder %s23, 5
      %p144 = por %p142, %p143
      %p145 = scmp.ne.s32.totalorder %s134, %s135
      %p146 = scmp.eq.s32.totalorder %s23, 0
      %p147 = por %p145, %p146
      %p148 = scmp.ne.s32.totalorder %s134, %s135
      %p149 = scmp.eq.s32.totalorder %s24, 5
      %p150 = por %p148, %p149
      %p152 = scmp.ne.s32.totalorder %s135, %s151
      %p153 = scmp.eq.s32.totalorder %s24, 0
      %p154 = por %p152, %p153
      %p155 = scmp.le.s32.totalorder 1, %s18
      %p156 = scmp.lt.s32.totalorder %s18, 7
      %p157 = pnand %p155, %p156
      %p158 = pneg %p157
      // Predicated region
      $region9: #{tpu_custom_call.1} parent=5 // pred_check
        _
      $region10: #{tpu_custom_call.1} parent=5 // pred_check_branch
        %160 = sbr.rel (%p157) target = $region12
      $region11: #{tpu_custom_call.1} parent=5 // pred_region
        %s161 = ssub.s32 %s18, 1
      $region12: #{tpu_custom_call.1} parent=5 // pred_fallthru
        _
      %p162 = scmp.lt.s32.totalorder %s18, 6
      // Predicated region
      $region13: #{tpu_custom_call.1} parent=5 // pred_check
        %p163 = pneg %p162
      $region14: #{tpu_custom_call.1} parent=5 // pred_check_branch
        %165 = sbr.rel (%p163) target = $region16
      $region15: #{tpu_custom_call.1} parent=5 // pred_region
        // Predicated region
        $region17: #{tpu_custom_call.1} parent=15 // pred_check
          %p166 = pneg %p57
        $region18: #{tpu_custom_call.1} parent=15 // pred_check_branch
          %168 = sbr.rel (%p166) target = $region20
        $region19: #{tpu_custom_call.1} parent=15 // pred_region
          %s169 = sand.u32 %s47, 1
          %s170 = scalar_lea.sflag [#allocation4], %s169
          %s171 = sand.u32 %s47, 1
          %s172 = smul.addr %s171, 8
          %s173 = scalar_lea.vmem [#allocation3], %s172
          %s175 = ssub.s32 128, 128
          %176 = vsyncadd %s170, %s175
          %s177 = smul.addr %s25, 128
          %s178 = scalar_lea.hbm %s0, %s177
          %s180 = sshll.u32 %s173, 4
          %s181 = int_to_ptr.vmem [resolvable:$true] %s180
          %183 = dma.hbm_to_vmem [thread:$0]  %s178, 128, %s181, %s170
        $region20: #{tpu_custom_call.1} parent=15 // pred_fallthru
          _
        // Predicated region
        $region21: #{tpu_custom_call.1} parent=15 // pred_check
          %p184 = pneg %p85
        $region22: #{tpu_custom_call.1} parent=15 // pred_check_branch
          %186 = sbr.rel (%p184) target = $region24
        $region23: #{tpu_custom_call.1} parent=15 // pred_region
          %s187 = sand.u32 %s18, 1
          %s188 = scalar_lea.sflag [#allocation7], %s187
          %s189 = sand.u32 %s75, 1
          %s190 = smul.addr %s189, 256
          %s191 = scalar_lea.vmem [#allocation6], %s190
          %s192 = smul.u32 2, %s26
          %s194 = ssub.s32 4096, 4096
          %195 = vsyncadd %s188, %s194
          %s196 = smul.addr %s27, 32
          %s197 = sadd.s32 %s192, %s196
          %s198 = smul.addr %s197, 128
          %s199 = scalar_lea.hbm %s1, %s198
          %s200 = sshll.u32 %s191, 4
          %s201 = int_to_ptr.vmem [resolvable:$true] %s200
          %206 = dma.hbm_to_vmem [thread:$0]  %s199, 4096, %s201, %s188, 256, 256, 16
        $region24: #{tpu_custom_call.1} parent=15 // pred_fallthru
          _
        // Predicated region
        $region25: #{tpu_custom_call.1} parent=15 // pred_check
          %p207 = pneg %p113
        $region26: #{tpu_custom_call.1} parent=15 // pred_check_branch
          %209 = sbr.rel (%p207) target = $region28
        $region27: #{tpu_custom_call.1} parent=15 // pred_region
          %s210 = sand.u32 %s18, 1
          %s211 = scalar_lea.sflag [#allocation7], %s210
          %s212 = sand.u32 %s103, 1
          %s213 = smul.addr %s212, 256
          %s214 = scalar_lea.vmem [#allocation8], %s213
          %s215 = smul.u32 2, %s26
          %s217 = ssub.s32 4096, 4096
          %218 = vsyncadd %s211, %s217
          %s219 = smul.addr %s27, 32
          %s220 = sadd.s32 %s215, %s219
          %s221 = smul.addr %s220, 128
          %s222 = scalar_lea.hbm %s2, %s221
          %s223 = sshll.u32 %s214, 4
          %s224 = int_to_ptr.vmem [resolvable:$true] %s223
          %229 = dma.hbm_to_vmem [thread:$0]  %s222, 4096, %s224, %s211, 256, 256, 16
        $region28: #{tpu_custom_call.1} parent=15 // pred_fallthru
          _
      $region16: #{tpu_custom_call.1} parent=5 // pred_fallthru
        _
      %p230 = scmp.le.s32.totalorder 1, %s18
      %p231 = scmp.lt.s32.totalorder %s18, 7
      %p232 = pnand %p230, %p231
      %p233 = pneg %p232
      // Predicated region
      $region29: #{tpu_custom_call.1} parent=5 // pred_check
        _
      $region30: #{tpu_custom_call.1} parent=5 // pred_check_branch
        %235 = sbr.rel (%p232) target = $region32
      $region31: #{tpu_custom_call.1} parent=5 // pred_region
        %s236 = ssub.s32 %s18, 1
        %s237 = sand.u32 %s50, 1
        %s238 = scalar_lea.sflag [#allocation4], %s237
        %s239 = sand.u32 %s50, 1
        %s240 = smul.addr %s239, 8
        %s241 = scalar_lea.vmem [#allocation3], %s240
        // Predicated region
        $region33: #{tpu_custom_call.1} parent=31 // pred_check
          %p242 = pneg %p63
        $region34: #{tpu_custom_call.1} parent=31 // pred_check_branch
          %244 = sbr.rel (%p242) target = $region36
        $region35: #{tpu_custom_call.1} parent=31 // pred_region
          %245 = dma.done %s238, 128
        $region36: #{tpu_custom_call.1} parent=31 // pred_fallthru
          _
        %s246 = sand.u32 %s23, 1
        %s247 = scalar_lea.sflag [#allocation7], %s246
        %s248 = sand.u32 %s78, 1
        %s249 = smul.addr %s248, 256
        %s250 = scalar_lea.vmem [#allocation6], %s249
        // Predicated region
        $region37: #{tpu_custom_call.1} parent=31 // pred_check
          %p251 = pneg %p91
        $region38: #{tpu_custom_call.1} parent=31 // pred_check_branch
          %253 = sbr.rel (%p251) target = $region40
        $region39: #{tpu_custom_call.1} parent=31 // pred_region
          %254 = dma.done %s247, 4096
        $region40: #{tpu_custom_call.1} parent=31 // pred_fallthru
          _
        %s255 = sand.u32 %s23, 1
        %s256 = scalar_lea.sflag [#allocation7], %s255
        %s257 = sand.u32 %s106, 1
        %s258 = smul.addr %s257, 256
        %s259 = scalar_lea.vmem [#allocation8], %s258
        // Predicated region
        $region41: #{tpu_custom_call.1} parent=31 // pred_check
          %p260 = pneg %p119
        $region42: #{tpu_custom_call.1} parent=31 // pred_check_branch
          %262 = sbr.rel (%p260) target = $region44
        $region43: #{tpu_custom_call.1} parent=31 // pred_region
          %263 = dma.done %s256, 4096
        $region44: #{tpu_custom_call.1} parent=31 // pred_fallthru
          _
        %s264 = sand.u32 %s50, 1
        %s265 = scalar_lea.sflag [#allocation4], %s264
        %s266 = sand.u32 %s50, 1
        %s267 = smul.addr %s266, 8
        %s268 = scalar_lea.vmem [#allocation3], %s267
        %p269 = pneg %p63
        %p270 = pneg %p60
        %s271 = sand.u32 %s23, 1
        %s272 = scalar_lea.sflag [#allocation7], %s271
        %s273 = sand.u32 %s78, 1
        %s274 = smul.addr %s273, 256
        %s275 = scalar_lea.vmem [#allocation6], %s274
        %p276 = pneg %p91
        %p277 = pneg %p88
        %s278 = sand.u32 %s23, 1
        %s279 = scalar_lea.sflag [#allocation7], %s278
        %s280 = sand.u32 %s106, 1
        %s281 = smul.addr %s280, 256
        %s282 = scalar_lea.vmem [#allocation8], %s281
        %p283 = pneg %p119
        %p284 = pneg %p116
        %p285 = pneg %p147
        %p286 = pneg %p144
        %s287 = sand.u32 %s134, 1
        %s288 = scalar_lea.sflag [#allocation5], %s287
        %s289 = sand.u32 %s134, 1
        %s290 = smul.addr %s289, 16
        %s291 = scalar_lea.vmem [#allocation9], %s290
        %s292 = smul.u32 2, %s29
        %s293 = smul.u32 2, %s29
        %s294 = smul.u32 2, %s29
        %p295 = scmp.eq.s32.totalorder %s30, 0
        // Predicated region
        $region45: #{tpu_custom_call.1} parent=31 // pred_check
          %p296 = pneg %p295
        $region46: #{tpu_custom_call.1} parent=31 // pred_check_branch
          %298 = sbr.rel (%p296) target = $region48
        $region47: #{tpu_custom_call.1} parent=31 // pred_region
          %299 = vst [vmem:[#allocation2] sm:$0xff] 0.0
          %300 = vst [vmem:[#allocation2 + $0x8] sm:$0xff] 0.0
        $region48: #{tpu_custom_call.1} parent=31 // pred_fallthru
          _
        %v301 = vld [vmem:[%s241] sm:$0xff]
        %v302 = vld [vmem:[%s250] sm:$0xff]
        %v303 = vld [vmem:[%s250 + $0x8] sm:$0xff]
        %v304 = vld [vmem:[%s250 + $0x10] sm:$0xff]
        %v305 = vld [vmem:[%s250 + $0x18] sm:$0xff]
        %v306 = vld [vmem:[%s250 + $0x20] sm:$0xff]
        %v307 = vld [vmem:[%s250 + $0x28] sm:$0xff]
        %v308 = vld [vmem:[%s250 + $0x30] sm:$0xff]
        %v309 = vld [vmem:[%s250 + $0x38] sm:$0xff]
        %v310 = vld [vmem:[%s250 + $0x40] sm:$0xff]
        %v311 = vld [vmem:[%s250 + $0x48] sm:$0xff]
        %v312 = vld [vmem:[%s250 + $0x50] sm:$0xff]
        %v313 = vld [vmem:[%s250 + $0x58] sm:$0xff]
        %v314 = vld [vmem:[%s250 + $0x60] sm:$0xff]
        %v315 = vld [vmem:[%s250 + $0x68] sm:$0xff]
        %v316 = vld [vmem:[%s250 + $0x70] sm:$0xff]
        %v317 = vld [vmem:[%s250 + $0x78] sm:$0xff]
        %v318 = vld [vmem:[%s250 + $0x80] sm:$0xff]
        %v319 = vld [vmem:[%s250 + $0x88] sm:$0xff]
        %v320 = vld [vmem:[%s250 + $0x90] sm:$0xff]
        %v321 = vld [vmem:[%s250 + $0x98] sm:$0xff]
        %v322 = vld [vmem:[%s250 + $0xa0] sm:$0xff]
        %v323 = vld [vmem:[%s250 + $0xa8] sm:$0xff]
        %v324 = vld [vmem:[%s250 + $0xb0] sm:$0xff]
        %v325 = vld [vmem:[%s250 + $0xb8] sm:$0xff]
        %v326 = vld [vmem:[%s250 + $0xc0] sm:$0xff]
        %v327 = vld [vmem:[%s250 + $0xc8] sm:$0xff]
        %v328 = vld [vmem:[%s250 + $0xd0] sm:$0xff]
        %v329 = vld [vmem:[%s250 + $0xd8] sm:$0xff]
        %v330 = vld [vmem:[%s250 + $0xe0] sm:$0xff]
        %v331 = vld [vmem:[%s250 + $0xe8] sm:$0xff]
        %v332 = vld [vmem:[%s250 + $0xf0] sm:$0xff]
        %v333 = vld [vmem:[%s250 + $0xf8] sm:$0xff]
        %334 = vmatprep.subr.mxu0 %v333
        %335 = vmatpush1.msra.mxu0 %v332
        %336 = vmatprep.subr.mxu0 %v331
        %337 = vmatpush1.msra.mxu0 %v330
        %338 = vmatprep.subr.mxu0 %v329
        %339 = vmatpush1.msra.mxu0 %v328
        %340 = vmatprep.subr.mxu0 %v327
        %341 = vmatpush1.msra.mxu0 %v326
        %342 = vmatprep.subr.mxu0 %v325
        %343 = vmatpush1.msra.mxu0 %v324
        %344 = vmatprep.subr.mxu0 %v323
        %345 = vmatpush1.msra.mxu0 %v322
        %346 = vmatprep.subr.mxu0 %v321
        %347 = vmatpush1.msra.mxu0 %v320
        %348 = vmatprep.subr.mxu0 %v319
        %349 = vmatpush1.msra.mxu0 %v318
        %350 = vmatprep.subr.mxu0 %v317
        %351 = vmatpush1.msra.mxu0 %v316
        %352 = vmatprep.subr.mxu0 %v315
        %353 = vmatpush1.msra.mxu0 %v314
        %354 = vmatprep.subr.mxu0 %v313
        %355 = vmatpush1.msra.mxu0 %v312
        %356 = vmatprep.subr.mxu0 %v311
        %357 = vmatpush1.msra.mxu0 %v310
        %358 = vmatprep.subr.mxu0 %v309
        %359 = vmatpush1.msra.mxu0 %v308
        %360 = vmatprep.subr.mxu0 %v307
        %361 = vmatpush1.msra.mxu0 %v306
        %362 = vmatprep.subr.mxu0 %v305
        %363 = vmatpush1.msra.mxu0 %v304
        %364 = vmatprep.subr.mxu0 %v303
        %365 = vmatpush1.msra.mxu0 %v302
        %366 = vmatprep.subr.mxu0 0.0
        %367 = vmatpush2.msra.mxu0 0.0
        %368 = vmatprep.subr.mxu0 0.0
        %369 = vmatpush2.msra.mxu0 0.0
        %370 = vmatprep.subr.mxu0 0.0
        %371 = vmatpush2.msra.mxu0 0.0
        %372 = vmatprep.subr.mxu0 0.0
        %373 = vmatpush2.msra.mxu0 0.0
        %374 = vmatprep.subr.mxu0 0.0
        %375 = vmatpush2.msra.mxu0 0.0
        %376 = vmatprep.subr.mxu0 0.0
        %377 = vmatpush2.msra.mxu0 0.0
        %378 = vmatprep.subr.mxu0 0.0
        %379 = vmatpush2.msra.mxu0 0.0
        %380 = vmatprep.subr.mxu0 0.0
        %381 = vmatpush2.msra.mxu0 0.0
        %382 = vmatprep.subr.mxu0 0.0
        %383 = vmatpush2.msra.mxu0 0.0
        %384 = vmatprep.subr.mxu0 0.0
        %385 = vmatpush2.msra.mxu0 0.0
        %386 = vmatprep.subr.mxu0 0.0
        %387 = vmatpush2.msra.mxu0 0.0
        %388 = vmatprep.subr.mxu0 0.0
        %389 = vmatpush2.msra.mxu0 0.0
        %390 = vmatprep.subr.mxu0 0.0
        %391 = vmatpush2.msra.mxu0 0.0
        %392 = vmatprep.subr.mxu0 0.0
        %393 = vmatpush2.msra.mxu0 0.0
        %394 = vmatprep.subr.mxu0 0.0
        %395 = vmatpush2.msra.mxu0 0.0
        %396 = vmatprep.subr.mxu0 0.0
        %397 = vmatpush2.msra.mxu0 0.0
        %398 = vmatprep.mubr.f32.mxu0 0.0
        %399 = vmatmul.mubr.f32.gmra.mxu0 %v301
        %v400 = vpop.f32.mrf.mxu0
        %v401 = vadd.f32 0.0, %v400
        %v402 = vpop.f32.mrf.mxu0
        %v403 = vadd.f32 0.0, %v402
        %404 = vdwg.mxu0
        %v405 = vld [vmem:[%s259] sm:$0xff]
        %v406 = vld [vmem:[%s259 + $0x8] sm:$0xff]
        %v407 = vld [vmem:[%s259 + $0x10] sm:$0xff]
        %v408 = vld [vmem:[%s259 + $0x18] sm:$0xff]
        %v409 = vld [vmem:[%s259 + $0x20] sm:$0xff]
        %v410 = vld [vmem:[%s259 + $0x28] sm:$0xff]
        %v411 = vld [vmem:[%s259 + $0x30] sm:$0xff]
        %v412 = vld [vmem:[%s259 + $0x38] sm:$0xff]
        %v413 = vld [vmem:[%s259 + $0x40] sm:$0xff]
        %v414 = vld [vmem:[%s259 + $0x48] sm:$0xff]
        %v415 = vld [vmem:[%s259 + $0x50] sm:$0xff]
        %v416 = vld [vmem:[%s259 + $0x58] sm:$0xff]
        %v417 = vld [vmem:[%s259 + $0x60] sm:$0xff]
        %v418 = vld [vmem:[%s259 + $0x68] sm:$0xff]
        %v419 = vld [vmem:[%s259 + $0x70] sm:$0xff]
        %v420 = vld [vmem:[%s259 + $0x78] sm:$0xff]
        %v421 = vld [vmem:[%s259 + $0x80] sm:$0xff]
        %v422 = vld [vmem:[%s259 + $0x88] sm:$0xff]
        %v423 = vld [vmem:[%s259 + $0x90] sm:$0xff]
        %v424 = vld [vmem:[%s259 + $0x98] sm:$0xff]
        %v425 = vld [vmem:[%s259 + $0xa0] sm:$0xff]
        %v426 = vld [vmem:[%s259 + $0xa8] sm:$0xff]
        %v427 = vld [vmem:[%s259 + $0xb0] sm:$0xff]
        %v428 = vld [vmem:[%s259 + $0xb8] sm:$0xff]
        %v429 = vld [vmem:[%s259 + $0xc0] sm:$0xff]
        %v430 = vld [vmem:[%s259 + $0xc8] sm:$0xff]
        %v431 = vld [vmem:[%s259 + $0xd0] sm:$0xff]
        %v432 = vld [vmem:[%s259 + $0xd8] sm:$0xff]
        %v433 = vld [vmem:[%s259 + $0xe0] sm:$0xff]
        %v434 = vld [vmem:[%s259 + $0xe8] sm:$0xff]
        %v435 = vld [vmem:[%s259 + $0xf0] sm:$0xff]
        %v436 = vld [vmem:[%s259 + $0xf8] sm:$0xff]
        %437 = vmatprep.subr.mxu0 %v436
        %438 = vmatpush1.msra.mxu0 %v435
        %439 = vmatprep.subr.mxu0 %v434
        %440 = vmatpush1.msra.mxu0 %v433
        %441 = vmatprep.subr.mxu0 %v432
        %442 = vmatpush1.msra.mxu0 %v431
        %443 = vmatprep.subr.mxu0 %v430
        %444 = vmatpush1.msra.mxu0 %v429
        %445 = vmatprep.subr.mxu0 %v428
        %446 = vmatpush1.msra.mxu0 %v427
        %447 = vmatprep.subr.mxu0 %v426
        %448 = vmatpush1.msra.mxu0 %v425
        %449 = vmatprep.subr.mxu0 %v424
        %450 = vmatpush1.msra.mxu0 %v423
        %451 = vmatprep.subr.mxu0 %v422
        %452 = vmatpush1.msra.mxu0 %v421
        %453 = vmatprep.subr.mxu0 %v420
        %454 = vmatpush1.msra.mxu0 %v419
        %455 = vmatprep.subr.mxu0 %v418
        %456 = vmatpush1.msra.mxu0 %v417
        %457 = vmatprep.subr.mxu0 %v416
        %458 = vmatpush1.msra.mxu0 %v415
        %459 = vmatprep.subr.mxu0 %v414
        %460 = vmatpush1.msra.mxu0 %v413
        %461 = vmatprep.subr.mxu0 %v412
        %462 = vmatpush1.msra.mxu0 %v411
        %463 = vmatprep.subr.mxu0 %v410
        %464 = vmatpush1.msra.mxu0 %v409
        %465 = vmatprep.subr.mxu0 %v408
        %466 = vmatpush1.msra.mxu0 %v407
        %467 = vmatprep.subr.mxu0 %v406
        %468 = vmatpush1.msra.mxu0 %v405
        %469 = vmatprep.subr.mxu0 0.0
        %470 = vmatpush2.msra.mxu0 0.0
        %471 = vmatprep.subr.mxu0 0.0
        %472 = vmatpush2.msra.mxu0 0.0
        %473 = vmatprep.subr.mxu0 0.0
        %474 = vmatpush2.msra.mxu0 0.0
        %475 = vmatprep.subr.mxu0 0.0
        %476 = vmatpush2.msra.mxu0 0.0
        %477 = vmatprep.subr.mxu0 0.0
        %478 = vmatpush2.msra.mxu0 0.0
        %479 = vmatprep.subr.mxu0 0.0
        %480 = vmatpush2.msra.mxu0 0.0
        %481 = vmatprep.subr.mxu0 0.0
        %482 = vmatpush2.msra.mxu0 0.0
        %483 = vmatprep.subr.mxu0 0.0
        %484 = vmatpush2.msra.mxu0 0.0
        %485 = vmatprep.subr.mxu0 0.0
        %486 = vmatpush2.msra.mxu0 0.0
        %487 = vmatprep.subr.mxu0 0.0
        %488 = vmatpush2.msra.mxu0 0.0
        %489 = vmatprep.subr.mxu0 0.0
        %490 = vmatpush2.msra.mxu0 0.0
        %491 = vmatprep.subr.mxu0 0.0
        %492 = vmatpush2.msra.mxu0 0.0
        %493 = vmatprep.subr.mxu0 0.0
        %494 = vmatpush2.msra.mxu0 0.0
        %495 = vmatprep.subr.mxu0 0.0
        %496 = vmatpush2.msra.mxu0 0.0
        %497 = vmatprep.subr.mxu0 0.0
        %498 = vmatpush2.msra.mxu0 0.0
        %499 = vmatprep.subr.mxu0 0.0
        %500 = vmatpush2.msra.mxu0 0.0
        %501 = vmatprep.mubr.f32.mxu0 0.0
        %502 = vmatmul.mubr.f32.gmra.mxu0 %v301
        %v503 = vpop.f32.mrf.mxu0
        %v504 = vadd.f32 0.0, %v503
        %v505 = vpop.f32.mrf.mxu0
        %v506 = vadd.f32 0.0, %v505
        %507 = vdwg.mxu0
        %v508 = vld [vmem:[#allocation2] sm:$0xff]
        %v509 = vld [vmem:[#allocation2 + $0x8] sm:$0xff]
        %v510 = vmul.f32 %v401, %v504
        %v511 = vmul.f32 %v403, %v506
        %v512 = vadd.f32 %v508, %v510
        %v513 = vadd.f32 %v509, %v511
        %514 = vst [vmem:[#allocation2] sm:$0xff] %v512
        %515 = vst [vmem:[#allocation2 + $0x8] sm:$0xff] %v513
        %p516 = scmp.eq.s32.totalorder %s30, 2
        // Predicated region
        $region49: #{tpu_custom_call.1} parent=31 // pred_check
          %p517 = pneg %p516
        $region50: #{tpu_custom_call.1} parent=31 // pred_check_branch
          %519 = sbr.rel (%p517) target = $region52
        $region51: #{tpu_custom_call.1} parent=31 // pred_region
          %v520 = vld [vmem:[#allocation2] sm:$0xff]
          %v521 = vld [vmem:[#allocation2 + $0x8] sm:$0xff]
          %522 = vst [vmem:[%s291] sm:$0xff] %v520
          %523 = vst [vmem:[%s291 + $0x8] sm:$0xff] %v521
        $region52: #{tpu_custom_call.1} parent=31 // pred_fallthru
          _
        %s524 = sand.u32 %s134, 1
        %s525 = scalar_lea.sflag [#allocation5], %s524
        %s526 = sand.u32 %s134, 1
        %s527 = smul.addr %s526, 16
        %s528 = scalar_lea.vmem [#allocation9], %s527
        // Predicated region
        $region53: #{tpu_custom_call.1} parent=31 // pred_check
          %p529 = pneg %p144
        $region54: #{tpu_custom_call.1} parent=31 // pred_check_branch
          %531 = sbr.rel (%p529) target = $region56
        $region55: #{tpu_custom_call.1} parent=31 // pred_region
          %s532 = smul.u32 2, %s29
          %s534 = ssub.s32 256, 256
          %535 = vsyncadd %s525, %s534
          %s536 = smul.addr %s28, 2
          %s537 = sadd.s32 %s532, %s536
          %s538 = smul.addr %s537, 128
          %s539 = scalar_lea.hbm %s3, %s538
          %s541 = sshll.u32 %s528, 4
          %s542 = int_to_ptr.vmem [resolvable:$true] %s541
          %544 = dma.vmem_to_hbm [thread:$0]  %s542, 256, %s539, %s525
        $region56: #{tpu_custom_call.1} parent=31 // pred_fallthru
          _
      $region32: #{tpu_custom_call.1} parent=5 // pred_fallthru
        _
      %p545 = scmp.le.s32.totalorder 2, %s18
      // Predicated region
      $region57: #{tpu_custom_call.1} parent=5 // pred_check
        %p546 = pneg %p545
      $region58: #{tpu_custom_call.1} parent=5 // pred_check_branch
        %548 = sbr.rel (%p546) target = $region60
      $region59: #{tpu_custom_call.1} parent=5 // pred_region
        %s549 = ssub.s32 %s18, 2
        // Predicated region
        $region61: #{tpu_custom_call.1} parent=59 // pred_check
          %p550 = pneg %p150
        $region62: #{tpu_custom_call.1} parent=59 // pred_check_branch
          %552 = sbr.rel (%p550) target = $region64
        $region63: #{tpu_custom_call.1} parent=59 // pred_region
          %s553 = sand.u32 %s135, 1
          %s554 = scalar_lea.sflag [#allocation5], %s553
          %s555 = sand.u32 %s135, 1
          %s556 = smul.addr %s555, 16
          %s557 = scalar_lea.vmem [#allocation9], %s556
          %558 = dma.done %s554, 256
        $region64: #{tpu_custom_call.1} parent=59 // pred_fallthru
          _
      $region60: #{tpu_custom_call.1} parent=5 // pred_fallthru
        _
    $region6: #{tpu_custom_call.1} parent=1 // loop_footer
      %s22 = sadd.s32 1, %s18
    $region7: #{tpu_custom_call.1} parent=1 // loop_footer_branch
      %17 = sbr.rel target = $region3
    $region8: #{tpu_custom_call.1} parent=1 // loop_exit
      _
    %559 = vsyncpa [#allocation4], 1
    %s560 = scalar_lea.sflag [#allocation4], 1
    %561 = vsyncpa %s560, 1
    %562 = vsyncpa [#allocation7], 1
    %s563 = scalar_lea.sflag [#allocation7], 1
    %564 = vsyncpa %s563, 1
    %565 = vsyncpa [#allocation5], 1
    %s566 = scalar_lea.sflag [#allocation5], 1
    %567 = vsyncpa %s566, 1

</llo_original>
